<compile_context>
chip_gen: v6e
topology: v6e:2x2x1
jax: 0.10.0
libtpu: 0.0.40
codegen_flags: <defaults>
</compile_context>

<pallas_src>
import jax
import jax.numpy as jnp
import numpy as np
from jax.experimental import pallas as pl
from jax.experimental.pallas import tpu as pltpu


def _rel_pos_bias_kernel(w_ref, o_ref):
    """w_ref: VMEM (1, W) f32;  o_ref: VMEM (1, TM, N) f32 (one query-row tile)."""
    tm = o_ref.shape[1]
    n = o_ref.shape[2]
    w_len = w_ref.shape[1]

    i0 = pl.program_id(0) * tm  # first query row handled by this tile

    # Broadcast w across the sublane (query-row) axis of the tile.
    w_rows = jnp.broadcast_to(w_ref[...], (tm, w_len))

    # Row i of the output is the contiguous window w[(N-1)-i : (2N-1)-i].
    # roll(x, s)[j] = x[(j - s) mod W]  =>  need s = (i0 + r) - (N-1) for row r.
    # (a) dynamic uniform roll by (i0 - (N-1)) mod W   -- same for all rows
    # (b) static strided roll adding +r per sublane    -- per-row stagger
    base = (i0 + (w_len - (n - 1))) % w_len            # == (i0 - (N-1)) mod W, >= 0
    shifted = pltpu.roll(w_rows, base, axis=1)                          # XLU, dynamic
    shifted = pltpu.roll(shifted, 0, axis=1, stride=1, stride_axis=0)   # XLU, static

    o_ref[0] = shifted[:, :n]


def _pick_row_tile(n: int, *, max_block_bytes: int = 4 * 1024 * 1024) -> int:
    """Largest row tile (multiple of 8, divides n) whose f32 output block stays
    under `max_block_bytes` per buffer (Pallas double-buffers the output)."""
    if n <= 8 or n % 8 != 0:
        return n                               # tiny / odd sizes: single block
    cap = max(8, max_block_bytes // (4 * n))   # rows per <= max_block_bytes block
    tm = 8
    while tm * 2 <= cap and n % (tm * 2) == 0:
        tm *= 2
    return tm


def relative_positional_bias(w, all_timestamps, max_seq_len):
    """Pallas equivalent of RelativePositionalBias(max_seq_len).forward(all_timestamps)."""
    del all_timestamps  # unused by the reference module as well
    n = int(max_seq_len)
    w = jnp.asarray(w, jnp.float32)
    assert w.shape == (2 * n - 1,)

    # Lane-aligned VMEM copy of w: (1, W) with W a multiple of 128 (>= 2N-1).
    w_len = max(128, ((2 * n - 1 + 127) // 128) * 128)
    w_row = jnp.pad(w, (0, w_len - (2 * n - 1))).reshape(1, w_len)

    tm = _pick_row_tile(n)
    if n % tm:
        tm = n
    num_tiles = n // tm

    return pl.pallas_call(
        _rel_pos_bias_kernel,
        out_shape=jax.ShapeDtypeStruct((1, n, n), jnp.float32),
        grid=(num_tiles,),
        in_specs=[pl.BlockSpec((1, w_len), lambda t: (0, 0))],
        out_specs=pl.BlockSpec((1, tm, n), lambda t: (0, t, 0)),
        compiler_params=pltpu.CompilerParams(
            dimension_semantics=("parallel",)),
    )(w_row)


if __name__ == "__main__":
    max_seq_len = 8
    batch = 2

    key = jax.random.PRNGKey(0)
    kw, kt = jax.random.split(key)
    # deterministic init matching torch.empty(2*n-1).normal_(mean=0, std=0.02)
    w = (0.02 * jax.random.normal(kw, (2 * max_seq_len - 1,))).astype(jnp.float32)
    # timestamps are unused by the forward; int32 here to avoid needing x64
    all_timestamps = jax.random.randint(
        kt, (batch, max_seq_len), 0, 1000, dtype=jnp.int32)

    out = relative_positional_bias(w, all_timestamps, max_seq_len)
    out = jax.block_until_ready(out)

    # reference check of the Toeplitz gather semantics
    n = max_seq_len
    w_np = np.asarray(w)
    idx = (n - 1) + np.arange(n)[None, :] - np.arange(n)[:, None]
    expected = w_np[idx][None]
    np.testing.assert_allclose(np.asarray(out), expected, rtol=1e-6, atol=1e-6)
    assert out.shape == (1, n, n) and out.dtype == jnp.float32

    print("KERNEL_OK")
</pallas_src>

<mosaic_0001>
module attributes {stable_mosaic.version = 11 : i64} {
  func.func @_rel_pos_bias_kernel(%arg0: i32, %arg1: memref<1x128xf32, #tpu.memory_space<vmem>>, %arg2: memref<1x8x8xf32, #tpu.memory_space<vmem>>) attributes {dimension_semantics = [#tpu.dimension_semantics<parallel>], iteration_bounds = array<i64: 1>, scalar_prefetch = 0 : i64, scratch_operands = 0 : i64, tpu.core_type = #tpu.core_type<tc>, window_params = [{pipeline_mode = #tpu.pipeline_mode<synchronous>, transform_indices = @transform_0, window_bounds = array<i64: 1, 128>}, {transform_indices = @transform_1, window_bounds = array<i64: 1, 8, 8>}]} {
    %c8_i32 = arith.constant 8 : i32
    %0 = arith.muli %arg0, %c8_i32 : i32
    %c0 = arith.constant 0 : index
    %c0_0 = arith.constant 0 : index
    %1 = vector.load %arg1[%c0, %c0_0] : memref<1x128xf32, #tpu.memory_space<vmem>>, vector<1x128xf32>
    %2 = vector.shape_cast %1 : vector<1x128xf32> to vector<1x128xf32>
    %3 = vector.broadcast %2 : vector<1x128xf32> to vector<8x128xf32>
    %c121_i32 = arith.constant 121 : i32
    %4 = arith.addi %0, %c121_i32 : i32
    %c128_i32 = arith.constant 128 : i32
    %c0_i32 = arith.constant 0 : i32
    %5 = arith.cmpi eq, %c128_i32, %c0_i32 : i32
    %c1_i32 = arith.constant 1 : i32
    %6 = arith.select %5, %c1_i32, %c128_i32 : i32
    %7 = arith.remsi %4, %6 : i32
    %c0_i32_1 = arith.constant 0 : i32
    %8 = arith.cmpi ne, %7, %c0_i32_1 : i32
    %c0_i32_2 = arith.constant 0 : i32
    %9 = arith.cmpi slt, %7, %c0_i32_2 : i32
    %c0_i32_3 = arith.constant 0 : i32
    %10 = arith.cmpi slt, %6, %c0_i32_3 : i32
    %11 = arith.xori %9, %10 : i1
    %12 = arith.andi %11, %8 : i1
    %13 = arith.addi %7, %6 : i32
    %14 = arith.select %12, %13, %7 : i32
    %15 = tpu.dynamic_rotate %3 by %14 dim 1 : vector<8x128xf32>, i32 -> vector<8x128xf32>
    %c0_i32_4 = arith.constant 0 : i32
    %16 = tpu.dynamic_rotate %15 by %c0_i32_4 dim 1 {stride = 1 : si32, stride_dimension = 0 : si32} : vector<8x128xf32>, i32 -> vector<8x128xf32>
    %17 = vector.extract_strided_slice %16 {offsets = [0, 0], sizes = [8, 8], strides = [1, 1]} : vector<8x128xf32> to vector<8x8xf32>
    %c0_5 = arith.constant 0 : index
    %c0_6 = arith.constant 0 : index
    %c0_7 = arith.constant 0 : index
    %18 = vector.load %arg2[%c0_5, %c0_6, %c0_7] : memref<1x8x8xf32, #tpu.memory_space<vmem>>, vector<1x8x8xf32>
    %19 = vector.shape_cast %18 : vector<1x8x8xf32> to vector<8x8xf32>
    %20 = vector.shape_cast %17 : vector<8x8xf32> to vector<1x8x8xf32>
    tpu.vector_store %arg2[%c0_5, %c0_6, %c0_7], %20 {strides = array<i32>} : memref<1x8x8xf32, #tpu.memory_space<vmem>>, vector<1x8x8xf32>,
    return
  }
  func.func @transform_0(%arg0: i32) -> (i32, i32) {
    %c0_i32 = arith.constant 0 : i32
    %c0_i32_0 = arith.constant 0 : i32
    %c0_i32_1 = arith.constant 0 : i32
    return %c0_i32, %c0_i32_0 : i32, i32
  }
  func.func @transform_1(%arg0: i32) -> (i32, i32, i32) {
    %c0_i32 = arith.constant 0 : i32
    %c0_i32_0 = arith.constant 0 : i32
    %c0_i32_1 = arith.constant 0 : i32
    return %c0_i32, %arg0, %c0_i32_0 : i32, i32, i32
  }
}

</mosaic_0001>

<llo_original>
// kernel: tpu_custom_call.1
$region0: #{tpu_custom_call.1}
  #allocation0 [shape = 'u32[]', space=smem, size = 0x4, offset = 0x4, fixed_abs, tag = 'smem constant byte address 0x4 - core index']
  #allocation1 [shape = 'u32[144,128]{1,0:T(1,128)}', space=vmem, size = 0x12000, scoped, tag = 'internal scratch']
  %s0 = inlined_call_operand.hbm [shape: f32[1,128], index: 0, kind: input, shape index: {}]
  %s1 = inlined_call_operand.hbm [shape: f32[1,8,8], index: 1, kind: output, shape index: {}]
  %s2 = sld [smem:[#allocation0]]
  $region18: #{tpu_custom_call.1} parent=0
    _
  %s4 = ssub.s32 1, %s2
  %s5 = scalar_select 0, %s4, %s2
  $region1: #{tpu_custom_call.1} parent=0
    #allocation2 [shape = 'u8[512]{0}', space=vmem, size = 0x400, scoped, tag = 'input window, operand 0, single buffered']
    #allocation3 [shape = 's32[1]{0}', space=sflag, size = 0x4, scoped, tag = 'scoped memory for tpu_custom_call.1']
    #allocation4 [shape = 's32[1]{0}', space=sflag, size = 0x4, scoped, tag = 'scoped memory for tpu_custom_call.1']
    #allocation5 [shape = 'u8[4096]{0}', space=vmem, size = 0x1000, scoped, tag = 'output window, operand 0, single buffered']
    %6 = vsyncpa [#allocation3], 0
    %7 = vsyncpa [#allocation4], 0
    // Predicated region
    $region2: #{tpu_custom_call.1} parent=1 // pred_check
      _
    $region3: #{tpu_custom_call.1} parent=1 // pred_check_branch
      %9 = sbr.rel (0) target = $region5
    $region4: #{tpu_custom_call.1} parent=1 // pred_region
      %s11 = ssub.s32 16, 16
      %12 = vsyncadd [#allocation3], %s11
      %s14 = sshll.u32 [#allocation2], 4
      %s15 = int_to_ptr.vmem [resolvable:$true] %s14
      %17 = dma.hbm_to_vmem [thread:$0]  %s0, 16, %s15, [#allocation3]
    $region5: #{tpu_custom_call.1} parent=1 // pred_fallthru
      _
    // Predicated region
    $region6: #{tpu_custom_call.1} parent=1 // pred_check
      _
    $region7: #{tpu_custom_call.1} parent=1 // pred_check_branch
      %19 = sbr.rel (0) target = $region9
    $region8: #{tpu_custom_call.1} parent=1 // pred_region
      %20 = dma.done [#allocation3], 16
    $region9: #{tpu_custom_call.1} parent=1 // pred_fallthru
      _
    %s21 = smul.u32 0, 8
    %v22 = vld [vmem:[#allocation2] sm:$0x1]
    %v24 = vlaneseq
    %v25 = vshrl.u32 %v24, 7
    %v26 = vsub.s32 0, %v25
    %v27 = vrot.slane %v22, %v26
    %s29 = sadd.s32 %s21, 121
    %p30 = scmp.lt.s32.totalorder %s29, 0
    %s31 = ssub.s32 0, %s29
    %s32 = scalar_select %p30, %s31, %s29
    %s33 = sand.u32 %s32, 127
    %s34 = ssub.s32 0, %s33
    %s35 = scalar_select %p30, %s34, %s33
    %p36 = scmp.ne.s32.totalorder %s35, 0
    %p37 = scmp.lt.s32.totalorder %s35, 0
    %p38 = pnand %p37, %p36
    %p39 = pneg %p38
    %s40 = sadd.s32 %s35, 128
    %s41 = scalar_select %p39, %s40, %s35
    %s42 = sand.u32 %s41, 127
    %s43 = sand.u32 %s42, 127
    %44 = vrot.lane.b32.xlu0 %v27, %s43
    %v45 = vpop.permute.xlu0 %44
    %47 = vrot.lane.b32.xlu0 %v45, 256
    %v48 = vpop.permute.xlu0 %47
    %vm49 = vcmask 64512
    %50 = vst.msk [vmem:[#allocation5] sm:$0xff] %vm49, %v48
    // Predicated region
    $region10: #{tpu_custom_call.1} parent=1 // pred_check
      _
    $region11: #{tpu_custom_call.1} parent=1 // pred_check_branch
      %52 = sbr.rel (0) target = $region13
    $region12: #{tpu_custom_call.1} parent=1 // pred_region
      %s54 = ssub.s32 128, 128
      %55 = vsyncadd [#allocation4], %s54
      %s57 = sshll.u32 [#allocation5], 4
      %s58 = int_to_ptr.vmem [resolvable:$true] %s57
      %60 = dma.vmem_to_hbm [thread:$0]  %s58, 128, %s1, [#allocation4]
    $region13: #{tpu_custom_call.1} parent=1 // pred_fallthru
      _
    // Predicated region
    $region14: #{tpu_custom_call.1} parent=1 // pred_check
      _
    $region15: #{tpu_custom_call.1} parent=1 // pred_check_branch
      %62 = sbr.rel (0) target = $region17
    $region16: #{tpu_custom_call.1} parent=1 // pred_region
      %63 = dma.done [#allocation4], 128
    $region17: #{tpu_custom_call.1} parent=1 // pred_fallthru
      _
    %64 = vsyncpa [#allocation3], 1
    %65 = vsyncpa [#allocation4], 1

</llo_original>
